<compile_context>
chip_gen: v5e
topology: v5e:2x2
jax: 0.10.0
libtpu: 0.0.40
codegen_flags: <defaults>
</compile_context>

<pallas_src>
import jax
import jax.numpy as jnp
from jax.experimental import pallas as pl
from jax.experimental.pallas import tpu as pltpu


def _concat_last_dim_kernel(v_ref, t_ref, o_ref):
    # Static split point: video features fill lanes [0, Dv), text [Dv, Dv+Dt).
    dv = v_ref.shape[-1]
    dt = t_ref.shape[-1]
    o_ref[..., 0:dv] = v_ref[...]
    o_ref[..., dv:dv + dt] = t_ref[...]


def _generation_params():
    """(target output-block bytes, scoped-VMEM limit bytes) per TPU generation.

    Double-buffered footprint of one step is ~4x the output block
    (inputs sum to the same bytes as the output, x2 buffers each)."""
    target = 4 << 20          # safe default for unknown hardware
    vmem_limit = 32 << 20
    try:
        info = pltpu.get_tpu_info()
        vmem_phys = getattr(info, "vmem_capacity_bytes", None)
        if vmem_phys is not None:
            if vmem_phys <= (64 << 20):
                # v7x: fast HBM makes per-step overhead dominant -> big blocks,
                # but physical VMEM is only 64 MiB -> cap the scoped limit.
                target, vmem_limit = 8 << 20, 48 << 20
            else:
                # v5e/v6e: 128 MiB physical VMEM, plenty of headroom.
                target, vmem_limit = 8 << 20, 64 << 20
    except Exception:
        pass
    return target, vmem_limit


def _choose_t_block(T, out_row_bytes, itemsize, B, target_bytes,
                    min_total_steps=8):
    """Sublane-aligned T-tile such that (a) one output block stays under
    `target_bytes` and (b) the grid has enough (and evenly splittable) steps
    for megacore sharding and DMA pipelining."""
    sub = {4: 8, 2: 16, 1: 32}.get(int(itemsize), 8)
    t_padded = pl.cdiv(T, sub) * sub
    max_tiles = max(1, t_padded // sub)

    # Tiles needed to respect the per-block byte budget.
    n_tiles = max(1, pl.cdiv(T * out_row_bytes, target_bytes))

    # Grow tile count until total steps >= min_total_steps and even (balanced
    # split across the 2 v7x TensorCores), bounded by the smallest legal tile.
    while (B * n_tiles < min_total_steps) or ((B * n_tiles) % 2 != 0):
        n_tiles += 1
        if n_tiles >= max_tiles:
            n_tiles = max_tiles
            break

    t_block = pl.cdiv(t_padded, n_tiles)
    t_block = pl.cdiv(t_block, sub) * sub       # keep sublane alignment
    return max(sub, min(t_block, t_padded))


_SMALL_OUT_BYTES = 1 << 20  # below ~1 MiB, a fused XLA concat beats a kernel launch


def feature_fusion(video_feature, text_feature, *, force_pallas=False):
    """out = concatenate([video_feature, text_feature], axis=-1) via Pallas."""
    assert video_feature.ndim == 3 and text_feature.ndim == 3, (
        "expected (batch, seq, hidden) inputs")
    assert video_feature.shape[:-1] == text_feature.shape[:-1], (
        "leading dims must match for concatenation along the last axis")
    assert video_feature.dtype == text_feature.dtype

    B, T, Dv = video_feature.shape
    Dt = text_feature.shape[-1]
    Do = Dv + Dt
    dtype = video_feature.dtype
    itemsize = jnp.dtype(dtype).itemsize
    out_bytes = B * T * Do * itemsize

    lane_aligned = (Dv % 128 == 0) and (Dt % 128 == 0)
    # Dispatch guards (perf only — Pallas path is correct for any shape):
    #  * tiny problems: launch + per-step overhead dwarf the copy;
    #  * unaligned split point: the text store would be masked vst.msk at a
    #    non-128 lane offset — XLA's fused concat is the better tool there.
    if not force_pallas and (out_bytes < _SMALL_OUT_BYTES or not lane_aligned):
        return jnp.concatenate([video_feature, text_feature], axis=-1)

    target_bytes, vmem_limit = _generation_params()
    t_block = _choose_t_block(T, Do * itemsize, itemsize, B, target_bytes)
    grid = (B, pl.cdiv(T, t_block))

    in_specs = [
        pl.BlockSpec((1, t_block, Dv), lambda b, t: (b, t, 0)),
        pl.BlockSpec((1, t_block, Dt), lambda b, t: (b, t, 0)),
    ]
    out_specs = pl.BlockSpec((1, t_block, Do), lambda b, t: (b, t, 0))

    return pl.pallas_call(
        _concat_last_dim_kernel,
        out_shape=jax.ShapeDtypeStruct((B, T, Do), dtype),
        grid=grid,
        in_specs=in_specs,
        out_specs=out_specs,
        compiler_params=pltpu.CompilerParams(
            dimension_semantics=("parallel", "parallel"),
            vmem_limit_bytes=vmem_limit,
        ),
        cost_estimate=pl.CostEstimate(
            flops=0,
            transcendentals=0,
            bytes_accessed=2 * out_bytes,  # read Dv+Dt, write Do
        ),
    )(video_feature, text_feature)


if __name__ == "__main__":
    key = jax.random.PRNGKey(0)
    k_v, k_t, k_v2, k_t2 = jax.random.split(key, 4)

    # 1) Module-consistent small shape: batch=2, seq=8, hidden=32.
    #    (Unaligned split -> dispatcher would fall back; force the kernel to
    #    exercise the masked-store path for correctness.)
    B, T, Dv, Dt = 2, 8, 32, 32
    video_feature = jax.random.normal(k_v, (B, T, Dv), dtype=jnp.float32)
    text_feature = jax.random.normal(k_t, (B, T, Dt), dtype=jnp.float32)
    ref = jnp.concatenate([video_feature, text_feature], axis=-1)

    out = feature_fusion(video_feature, text_feature, force_pallas=True)
    out = jax.block_until_ready(out)
    assert out.shape == (B, T, Dv + Dt)
    assert jnp.array_equal(out, ref)

    # Dispatch path (small + unaligned -> XLA concat).
    out_small = jax.block_until_ready(feature_fusion(video_feature, text_feature))
    assert jnp.array_equal(out_small, ref)

    # 2) Lane-aligned case (Dv = Dt = 128): dense, unmasked stores and a
    #    multi-step grid (also exercises the ragged-T cdiv path: T=20).
    B2, T2, Dv2, Dt2 = 2, 20, 128, 128
    v2 = jax.random.normal(k_v2, (B2, T2, Dv2), dtype=jnp.float32)
    t2 = jax.random.normal(k_t2, (B2, T2, Dt2), dtype=jnp.float32)
    ref2 = jnp.concatenate([v2, t2], axis=-1)
    out2 = jax.block_until_ready(feature_fusion(v2, t2, force_pallas=True))
    assert out2.shape == (B2, T2, Dv2 + Dt2)
    assert jnp.array_equal(out2, ref2)

    print("KERNEL_OK")
</pallas_src>

<mosaic_0001>
module attributes {stable_mosaic.version = 11 : i64} {
  func.func @_concat_last_dim_kernel(%arg0: i32, %arg1: i32, %arg2: memref<1x8x32xf32, #tpu.memory_space<vmem>>, %arg3: memref<1x8x32xf32, #tpu.memory_space<vmem>>, %arg4: memref<1x8x64xf32, #tpu.memory_space<vmem>>) attributes {dimension_semantics = [#tpu.dimension_semantics<parallel>, #tpu.dimension_semantics<parallel>], iteration_bounds = array<i64: 2, 1>, scalar_prefetch = 0 : i64, scratch_operands = 0 : i64, tpu.core_type = #tpu.core_type<tc>, window_params = [{transform_indices = @transform_0, window_bounds = array<i64: 1, 8, 32>}, {transform_indices = @transform_1, window_bounds = array<i64: 1, 8, 32>}, {transform_indices = @transform_2, window_bounds = array<i64: 1, 8, 64>}]} {
    %c0 = arith.constant 0 : index
    %c0_0 = arith.constant 0 : index
    %c0_1 = arith.constant 0 : index
    %0 = vector.load %arg2[%c0, %c0_0, %c0_1] : memref<1x8x32xf32, #tpu.memory_space<vmem>>, vector<1x8x32xf32>
    %c0_2 = arith.constant 0 : index
    %c0_3 = arith.constant 0 : index
    %c0_4 = arith.constant 0 : index
    %1 = vector.load %arg4[%c0_2, %c0_3, %c0_4] : memref<1x8x64xf32, #tpu.memory_space<vmem>>, vector<1x8x32xf32>
    tpu.vector_store %arg4[%c0_2, %c0_3, %c0_4], %0 {strides = array<i32>} : memref<1x8x64xf32, #tpu.memory_space<vmem>>, vector<1x8x32xf32>,
    %c0_5 = arith.constant 0 : index
    %c0_6 = arith.constant 0 : index
    %c0_7 = arith.constant 0 : index
    %2 = vector.load %arg3[%c0_5, %c0_6, %c0_7] : memref<1x8x32xf32, #tpu.memory_space<vmem>>, vector<1x8x32xf32>
    %c0_8 = arith.constant 0 : index
    %c0_9 = arith.constant 0 : index
    %c32 = arith.constant 32 : index
    %3 = vector.load %arg4[%c0_8, %c0_9, %c32] : memref<1x8x64xf32, #tpu.memory_space<vmem>>, vector<1x8x32xf32>
    tpu.vector_store %arg4[%c0_8, %c0_9, %c32], %2 {strides = array<i32>} : memref<1x8x64xf32, #tpu.memory_space<vmem>>, vector<1x8x32xf32>,
    return
  }
  func.func @transform_0(%arg0: i32, %arg1: i32) -> (i32, i32, i32) {
    %c0_i32 = arith.constant 0 : i32
    %c0_i32_0 = arith.constant 0 : i32
    return %arg0, %arg1, %c0_i32 : i32, i32, i32
  }
  func.func @transform_1(%arg0: i32, %arg1: i32) -> (i32, i32, i32) {
    %c0_i32 = arith.constant 0 : i32
    %c0_i32_0 = arith.constant 0 : i32
    return %arg0, %arg1, %c0_i32 : i32, i32, i32
  }
  func.func @transform_2(%arg0: i32, %arg1: i32) -> (i32, i32, i32) {
    %c0_i32 = arith.constant 0 : i32
    %c0_i32_0 = arith.constant 0 : i32
    return %arg0, %arg1, %c0_i32 : i32, i32, i32
  }
}

</mosaic_0001>

<llo_original>
// kernel: tpu_custom_call.1
$region0: #{tpu_custom_call.1}
  #allocation0 [shape = 'u32[]', space=smem, size = 0x4, offset = 0x4, fixed_abs, tag = 'smem constant byte address 0x4 - core index']
  #allocation1 [shape = 'u32[72,128]{1,0:T(1,128)}', space=vmem, size = 0x9000, scoped, tag = 'internal scratch']
  %s0 = inlined_call_operand.hbm [shape: f32[2,8,32], index: 0, kind: input, shape index: {}]
  %s1 = inlined_call_operand.hbm [shape: f32[2,8,32], index: 1, kind: input, shape index: {}]
  %s2 = inlined_call_operand.hbm [shape: f32[2,8,64], index: 2, kind: output, shape index: {}]
  %s3 = sld [smem:[#allocation0]]
  $region49: #{tpu_custom_call.1} parent=0
    _
  %s5 = ssub.s32 1, %s3
  %s6 = scalar_select 0, %s5, %s3
  $region1: #{tpu_custom_call.1} parent=0
    #allocation2 [shape = 'u8[8192]{0}', space=vmem, size = 0x2000, scoped, tag = 'input window, operand 0']
    #allocation3 [shape = 's32[2]{0}', space=sflag, size = 0x8, scoped, tag = 'scoped memory for tpu_custom_call.1']
    #allocation4 [shape = 's32[2]{0}', space=sflag, size = 0x8, scoped, tag = 'scoped memory for tpu_custom_call.1']
    #allocation5 [shape = 'u8[8192]{0}', space=vmem, size = 0x2000, scoped, tag = 'input window, operand 1']
    #allocation6 [shape = 's32[2]{0}', space=sflag, size = 0x8, scoped, tag = 'scoped memory for tpu_custom_call.1']
    #allocation7 [shape = 'u8[8192]{0}', space=vmem, size = 0x2000, scoped, tag = 'output window, operand 0']
    %7 = vsyncpa [#allocation3], 0
    %s8 = scalar_lea.sflag [#allocation3], 1
    %9 = vsyncpa %s8, 0
    %10 = vsyncpa [#allocation6], 0
    %s11 = scalar_lea.sflag [#allocation6], 1
    %12 = vsyncpa %s11, 0
    %13 = vsyncpa [#allocation4], 0
    %s14 = scalar_lea.sflag [#allocation4], 1
    %15 = vsyncpa %s14, 0
    loop: start=0, step=1, limit=4
    $region2: #{tpu_custom_call.1} parent=1 // loop_pre_header
      _
    $region3: #{tpu_custom_call.1} parent=1 // loop_header
      %s17 = sphi 0, %s21
      %p18 = scmp.ge.s32.totalorder %s17, 4
      %s24 = sphi 0, %s36
      %s25 = sphi 0, %s32
      %s26 = sphi 0, %s24
      %s27 = sphi 0, %s25
      %s28 = sphi 0, %s26
      %s29 = sphi 0, %s27
      %s41 = sphi 0, %s43
      %s44 = sphi 0, %s41
      %s45 = sphi 0, %s44
      %s61 = sphi 0, %s45
      %s69 = sphi 0, %s71
      %s72 = sphi 0, %s69
      %s73 = sphi 0, %s72
      %s89 = sphi 0, %s73
      %s97 = sphi 0, %s99
      %s100 = sphi 0, %s97
      %s101 = sphi 0, %s100
      %s117 = sphi 0, %s101
    $region4: #{tpu_custom_call.1} parent=1 // loop_header_branch
      %20 = sbr.rel (%p18) target = $region8
    $region5: #{tpu_custom_call.1} parent=1 // loop_body
      %s22 = ssub.s32 %s17, 1
      %s23 = ssub.s32 %s17, 2
      %s30 = sadd.s32 1, %s25
      %p31 = scmp.ge.s32.totalorder %s30, 1
      %s32 = scalar_select %p31, 0, %s30
      %s33 = sadd.s32 1, %s24
      %s34 = scalar_select %p31, %s33, %s24
      %p35 = scmp.ge.s32.totalorder %s34, 2
      %s36 = scalar_select %p35, 0, %s34
      %s37 = ssub.s32 %s24, %s36
      %s38 = ssub.s32 %s25, %s32
      %s39 = sor.u32 %s37, %s38
      %p40 = scmp.eq.s32.totalorder %s39, 0
      %s42 = sadd.s32 %s41, 1
      %s43 = scalar_select %p40, %s41, %s42
      %p46 = pneg %p40
      %p47 = scmp.eq.s32.totalorder %s17, 1
      %p48 = por %p46, %p47
      %p49 = scmp.ne.s32.totalorder %s41, %s44
      %p50 = scmp.eq.s32.totalorder %s17, 0
      %p51 = por %p49, %p50
      %p52 = scmp.ne.s32.totalorder %s41, %s44
      %p53 = scmp.eq.s32.totalorder %s22, 1
      %p54 = por %p52, %p53
      %p55 = scmp.ne.s32.totalorder %s44, %s45
      %p56 = scmp.eq.s32.totalorder %s22, 0
      %p57 = por %p55, %p56
      %p58 = scmp.ne.s32.totalorder %s44, %s45
      %p59 = scmp.eq.s32.totalorder %s23, 1
      %p60 = por %p58, %p59
      %p62 = scmp.ne.s32.totalorder %s45, %s61
      %p63 = scmp.eq.s32.totalorder %s23, 0
      %p64 = por %p62, %p63
      %s65 = ssub.s32 %s24, %s36
      %s66 = ssub.s32 %s25, %s32
      %s67 = sor.u32 %s65, %s66
      %p68 = scmp.eq.s32.totalorder %s67, 0
      %s70 = sadd.s32 %s69, 1
      %s71 = scalar_select %p68, %s69, %s70
      %p74 = pneg %p68
      %p75 = scmp.eq.s32.totalorder %s17, 1
      %p76 = por %p74, %p75
      %p77 = scmp.ne.s32.totalorder %s69, %s72
      %p78 = scmp.eq.s32.totalorder %s17, 0
      %p79 = por %p77, %p78
      %p80 = scmp.ne.s32.totalorder %s69, %s72
      %p81 = scmp.eq.s32.totalorder %s22, 1
      %p82 = por %p80, %p81
      %p83 = scmp.ne.s32.totalorder %s72, %s73
      %p84 = scmp.eq.s32.totalorder %s22, 0
      %p85 = por %p83, %p84
      %p86 = scmp.ne.s32.totalorder %s72, %s73
      %p87 = scmp.eq.s32.totalorder %s23, 1
      %p88 = por %p86, %p87
      %p90 = scmp.ne.s32.totalorder %s73, %s89
      %p91 = scmp.eq.s32.totalorder %s23, 0
      %p92 = por %p90, %p91
      %s93 = ssub.s32 %s24, %s36
      %s94 = ssub.s32 %s25, %s32
      %s95 = sor.u32 %s93, %s94
      %p96 = scmp.eq.s32.totalorder %s95, 0
      %s98 = sadd.s32 %s97, 1
      %s99 = scalar_select %p96, %s97, %s98
      %p102 = pneg %p96
      %p103 = scmp.eq.s32.totalorder %s17, 1
      %p104 = por %p102, %p103
      %p105 = scmp.ne.s32.totalorder %s97, %s100
      %p106 = scmp.eq.s32.totalorder %s17, 0
      %p107 = por %p105, %p106
      %p108 = scmp.ne.s32.totalorder %s97, %s100
      %p109 = scmp.eq.s32.totalorder %s22, 1
      %p110 = por %p108, %p109
      %p111 = scmp.ne.s32.totalorder %s100, %s101
      %p112 = scmp.eq.s32.totalorder %s22, 0
      %p113 = por %p111, %p112
      %p114 = scmp.ne.s32.totalorder %s100, %s101
      %p115 = scmp.eq.s32.totalorder %s23, 1
      %p116 = por %p114, %p115
      %p118 = scmp.ne.s32.totalorder %s101, %s117
      %p119 = scmp.eq.s32.totalorder %s23, 0
      %p120 = por %p118, %p119
      %p121 = scmp.le.s32.totalorder 1, %s17
      %p122 = scmp.lt.s32.totalorder %s17, 3
      %p123 = pnand %p121, %p122
      %p124 = pneg %p123
      // Predicated region
      $region9: #{tpu_custom_call.1} parent=5 // pred_check
        _
      $region10: #{tpu_custom_call.1} parent=5 // pred_check_branch
        %126 = sbr.rel (%p123) target = $region12
      $region11: #{tpu_custom_call.1} parent=5 // pred_region
        %s127 = ssub.s32 %s17, 1
      $region12: #{tpu_custom_call.1} parent=5 // pred_fallthru
        _
      %p128 = scmp.lt.s32.totalorder %s17, 2
      // Predicated region
      $region13: #{tpu_custom_call.1} parent=5 // pred_check
        %p129 = pneg %p128
      $region14: #{tpu_custom_call.1} parent=5 // pred_check_branch
        %131 = sbr.rel (%p129) target = $region16
      $region15: #{tpu_custom_call.1} parent=5 // pred_region
        // Predicated region
        $region17: #{tpu_custom_call.1} parent=15 // pred_check
          %p132 = pneg %p51
        $region18: #{tpu_custom_call.1} parent=15 // pred_check_branch
          %134 = sbr.rel (%p132) target = $region20
        $region19: #{tpu_custom_call.1} parent=15 // pred_region
          %s135 = sand.u32 %s41, 1
          %s136 = scalar_lea.sflag [#allocation3], %s135
          %s137 = sand.u32 %s41, 1
          %s138 = smul.addr %s137, 8
          %s139 = scalar_lea.vmem [#allocation2], %s138
          %141 = vsyncadd %s136, 0
          %s142 = sadd.s32 %s25, %s24
          %s143 = smul.addr %s142, 8
          %s144 = scalar_lea.hbm %s0, %s143
          %s146 = sshll.u32 %s144, 4
          %s147 = int_to_ptr.hbm [resolvable:$true] %s146
          %s148 = sshll.u32 %s139, 4
          %s149 = int_to_ptr.vmem [resolvable:$true] %s148
          %151 = dma.hbm_to_vmem [thread:$0]  %s147, 128, %s149, %s136
        $region20: #{tpu_custom_call.1} parent=15 // pred_fallthru
          _
        // Predicated region
        $region21: #{tpu_custom_call.1} parent=15 // pred_check
          %p152 = pneg %p79
        $region22: #{tpu_custom_call.1} parent=15 // pred_check_branch
          %154 = sbr.rel (%p152) target = $region24
        $region23: #{tpu_custom_call.1} parent=15 // pred_region
          %s155 = sand.u32 %s69, 1
          %s156 = scalar_lea.sflag [#allocation6], %s155
          %s157 = sand.u32 %s69, 1
          %s158 = smul.addr %s157, 8
          %s159 = scalar_lea.vmem [#allocation5], %s158
          %161 = vsyncadd %s156, 0
          %s162 = sadd.s32 %s25, %s24
          %s163 = smul.addr %s162, 8
          %s164 = scalar_lea.hbm %s1, %s163
          %s166 = sshll.u32 %s164, 4
          %s167 = int_to_ptr.hbm [resolvable:$true] %s166
          %s168 = sshll.u32 %s159, 4
          %s169 = int_to_ptr.vmem [resolvable:$true] %s168
          %171 = dma.hbm_to_vmem [thread:$0]  %s167, 128, %s169, %s156
        $region24: #{tpu_custom_call.1} parent=15 // pred_fallthru
          _
      $region16: #{tpu_custom_call.1} parent=5 // pred_fallthru
        _
      %p172 = scmp.le.s32.totalorder 1, %s17
      %p173 = scmp.lt.s32.totalorder %s17, 3
      %p174 = pnand %p172, %p173
      %p175 = pneg %p174
      // Predicated region
      $region25: #{tpu_custom_call.1} parent=5 // pred_check
        _
      $region26: #{tpu_custom_call.1} parent=5 // pred_check_branch
        %177 = sbr.rel (%p174) target = $region28
      $region27: #{tpu_custom_call.1} parent=5 // pred_region
        %s178 = ssub.s32 %s17, 1
        %s179 = sand.u32 %s44, 1
        %s180 = scalar_lea.sflag [#allocation3], %s179
        %s181 = sand.u32 %s44, 1
        %s182 = smul.addr %s181, 8
        %s183 = scalar_lea.vmem [#allocation2], %s182
        // Predicated region
        $region29: #{tpu_custom_call.1} parent=27 // pred_check
          %p184 = pneg %p57
        $region30: #{tpu_custom_call.1} parent=27 // pred_check_branch
          %186 = sbr.rel (%p184) target = $region32
        $region31: #{tpu_custom_call.1} parent=27 // pred_region
          %188 = dma.done %s180, 128
        $region32: #{tpu_custom_call.1} parent=27 // pred_fallthru
          _
        %s189 = sand.u32 %s72, 1
        %s190 = scalar_lea.sflag [#allocation6], %s189
        %s191 = sand.u32 %s72, 1
        %s192 = smul.addr %s191, 8
        %s193 = scalar_lea.vmem [#allocation5], %s192
        // Predicated region
        $region33: #{tpu_custom_call.1} parent=27 // pred_check
          %p194 = pneg %p85
        $region34: #{tpu_custom_call.1} parent=27 // pred_check_branch
          %196 = sbr.rel (%p194) target = $region36
        $region35: #{tpu_custom_call.1} parent=27 // pred_region
          %198 = dma.done %s190, 128
        $region36: #{tpu_custom_call.1} parent=27 // pred_fallthru
          _
        %s199 = sand.u32 %s44, 1
        %s200 = scalar_lea.sflag [#allocation3], %s199
        %s201 = sand.u32 %s44, 1
        %s202 = smul.addr %s201, 8
        %s203 = scalar_lea.vmem [#allocation2], %s202
        %p204 = pneg %p57
        %p205 = pneg %p54
        %s206 = sand.u32 %s72, 1
        %s207 = scalar_lea.sflag [#allocation6], %s206
        %s208 = sand.u32 %s72, 1
        %s209 = smul.addr %s208, 8
        %s210 = scalar_lea.vmem [#allocation5], %s209
        %p211 = pneg %p85
        %p212 = pneg %p82
        %p213 = pneg %p113
        %p214 = pneg %p110
        %s215 = sand.u32 %s100, 1
        %s216 = scalar_lea.sflag [#allocation4], %s215
        %s217 = sand.u32 %s100, 1
        %s218 = smul.addr %s217, 8
        %s219 = scalar_lea.vmem [#allocation7], %s218
        %v220 = vld [vmem:[%s183] sm:$0xff]
        %vm221 = vcmask 261120
        %222 = vst.msk [vmem:[%s219] sm:$0xff] %vm221, %v220
        %v223 = vld [vmem:[%s193] sm:$0xff]
        %225 = vrot.lane.b32.xlu0 %v223, 32
        %v226 = vpop.permute.xlu0 %225
        %vm228 = vcmask 523520
        %229 = vst.msk [vmem:[%s219] sm:$0xff] %vm228, %v226
        %s230 = sand.u32 %s100, 1
        %s231 = scalar_lea.sflag [#allocation4], %s230
        %s232 = sand.u32 %s100, 1
        %s233 = smul.addr %s232, 8
        %s234 = scalar_lea.vmem [#allocation7], %s233
        // Predicated region
        $region37: #{tpu_custom_call.1} parent=27 // pred_check
          %p235 = pneg %p110
        $region38: #{tpu_custom_call.1} parent=27 // pred_check_branch
          %237 = sbr.rel (%p235) target = $region40
        $region39: #{tpu_custom_call.1} parent=27 // pred_region
          %239 = vsyncadd %s231, 0
          %s240 = sadd.s32 %s27, %s26
          %s241 = smul.addr %s240, 8
          %s242 = scalar_lea.hbm %s2, %s241
          %s244 = sshll.u32 %s234, 4
          %s245 = int_to_ptr.vmem [resolvable:$true] %s244
          %s246 = sshll.u32 %s242, 4
          %s247 = int_to_ptr.hbm [resolvable:$true] %s246
          %249 = dma.vmem_to_hbm [thread:$0]  %s245, 128, %s247, %s231
        $region40: #{tpu_custom_call.1} parent=27 // pred_fallthru
          _
      $region28: #{tpu_custom_call.1} parent=5 // pred_fallthru
        _
      %p250 = scmp.le.s32.totalorder 2, %s17
      // Predicated region
      $region41: #{tpu_custom_call.1} parent=5 // pred_check
        %p251 = pneg %p250
      $region42: #{tpu_custom_call.1} parent=5 // pred_check_branch
        %253 = sbr.rel (%p251) target = $region44
      $region43: #{tpu_custom_call.1} parent=5 // pred_region
        %s254 = ssub.s32 %s17, 2
        // Predicated region
        $region45: #{tpu_custom_call.1} parent=43 // pred_check
          %p255 = pneg %p116
        $region46: #{tpu_custom_call.1} parent=43 // pred_check_branch
          %257 = sbr.rel (%p255) target = $region48
        $region47: #{tpu_custom_call.1} parent=43 // pred_region
          %s258 = sand.u32 %s101, 1
          %s259 = scalar_lea.sflag [#allocation4], %s258
          %s260 = sand.u32 %s101, 1
          %s261 = smul.addr %s260, 8
          %s262 = scalar_lea.vmem [#allocation7], %s261
          %264 = dma.done %s259, 128
        $region48: #{tpu_custom_call.1} parent=43 // pred_fallthru
          _
      $region44: #{tpu_custom_call.1} parent=5 // pred_fallthru
        _
    $region6: #{tpu_custom_call.1} parent=1 // loop_footer
      %s21 = sadd.s32 1, %s17
    $region7: #{tpu_custom_call.1} parent=1 // loop_footer_branch
      %16 = sbr.rel target = $region3
    $region8: #{tpu_custom_call.1} parent=1 // loop_exit
      _
    %265 = vsyncpa [#allocation3], 1
    %s266 = scalar_lea.sflag [#allocation3], 1
    %267 = vsyncpa %s266, 1
    %268 = vsyncpa [#allocation6], 1
    %s269 = scalar_lea.sflag [#allocation6], 1
    %270 = vsyncpa %s269, 1
    %271 = vsyncpa [#allocation4], 1
    %s272 = scalar_lea.sflag [#allocation4], 1
    %273 = vsyncpa %s272, 1

</llo_original>
